<compile_context>
chip_gen: v7x
topology: tpu7x:2x2x1
jax: 0.10.0
libtpu: 0.0.40
codegen_flags: <defaults>
</compile_context>

<pallas_src>
import functools
import math

import jax
import jax.numpy as jnp
from jax import lax
from jax.experimental import pallas as pl
from jax.experimental.pallas import tpu as pltpu


def _round_up(x, m):
    return ((x + m - 1) // m) * m


def _vmem_capacity_bytes():
    """Generation-aware VMEM capacity (128 MiB v5e/v6e, 64 MiB per-TC v7x)."""
    default = 64 * 1024 * 1024
    try:
        info = pltpu.get_tpu_info()
    except Exception:
        return default
    for attr in ("vmem_capacity_bytes", "vmem_bytes", "vmem_size_bytes"):
        val = getattr(info, attr, None)
        if val:
            return int(val)
    return default


def _gelu(h, approximate):
    if approximate:
        # tanh approximation lands on the EUP (free slot) instead of a VALU erf poly.
        return jax.nn.gelu(h, approximate=True)
    # exact GELU (PyTorch nn.GELU default): 0.5 * x * (1 + erf(x / sqrt(2)))
    return 0.5 * h * (1.0 + lax.erf(h * jnp.float32(1.0 / math.sqrt(2.0))))


def _gelu_ln_project(h, gamma, beta, w2, b2, out_dtype, approximate_gelu):
    """f32 epilogue: GELU -> LayerNorm (one-pass stats) -> output projection."""
    h = _gelu(h, approximate_gelu)
    mean = jnp.mean(h, axis=-1, keepdims=True)
    mean_sq = jnp.mean(h * h, axis=-1, keepdims=True)
    var = jnp.maximum(mean_sq - mean * mean, jnp.float32(0.0))
    hn = (h - mean) * lax.rsqrt(var + jnp.float32(1e-5))
    hn = hn * gamma + beta
    out = jnp.dot(hn.astype(w2.dtype), w2, preferred_element_type=jnp.float32) + b2
    return out.astype(out_dtype)


def _resident_kernel(x_ref, w1_ref, b1_ref, gamma_ref, beta_ref, w2_ref, b2_ref,
                     o_ref, *, approximate_gelu):
    # W1/W2 fully VMEM-resident; one row tile per grid step.
    h = jnp.dot(x_ref[...], w1_ref[...], preferred_element_type=jnp.float32)
    h = h + b1_ref[...].astype(jnp.float32)
    o_ref[...] = _gelu_ln_project(
        h,
        gamma_ref[...].astype(jnp.float32),
        beta_ref[...].astype(jnp.float32),
        w2_ref[...],
        b2_ref[...].astype(jnp.float32),
        o_ref.dtype,
        approximate_gelu)


def _kstream_kernel(x_ref, w1_ref, b1_ref, gamma_ref, beta_ref, w2_ref, b2_ref,
                    o_ref, acc_ref, *, approximate_gelu):
    # W1 streamed along K; accumulate into f32 scratch, finalize on the last K step.
    k = pl.program_id(1)

    @pl.when(k == 0)
    def _():
        acc_ref[...] = jnp.zeros_like(acc_ref)

    acc_ref[...] += jnp.dot(x_ref[...], w1_ref[...],
                            preferred_element_type=jnp.float32)

    @pl.when(k == pl.num_programs(1) - 1)
    def _():
        h = acc_ref[...] + b1_ref[...].astype(jnp.float32)
        o_ref[...] = _gelu_ln_project(
            h,
            gamma_ref[...].astype(jnp.float32),
            beta_ref[...].astype(jnp.float32),
            w2_ref[...],
            b2_ref[...].astype(jnp.float32),
            o_ref.dtype,
            approximate_gelu)


def regression_head(features, params, *, tile_m=None, tile_k=512, mxu_dtype=None,
                    k_stream=None, approximate_gelu=False):
    """features: (..., E) -> (..., O). Hot path runs in a single Pallas kernel.

    mxu_dtype:  optionally cast x/W1/W2 (e.g. jnp.bfloat16) for native MXU speed;
                accumulation stays f32.  Default None = exact input precision.
    k_stream:   None = auto (stream W1 along K when it overflows VMEM), or force.
    """
    w1, b1, gamma, beta, w2, b2 = (params["w1"], params["b1"], params["gamma"],
                                   params["beta"], params["w2"], params["b2"])
    E = w1.shape[0]
    O = w2.shape[1]
    lead_shape = features.shape[:-1]
    out_dtype = features.dtype

    x = features.reshape(-1, E)
    N = x.shape[0]

    # Optional low-precision MXU path (f32 operands force multi-pass matmuls on
    # v5e/v6e and are not native on v7x).  Halves W1/W2 HBM + VMEM bytes too.
    if mxu_dtype is not None:
        x = x.astype(mxu_dtype)
        w1 = w1.astype(mxu_dtype)
        w2 = w2.astype(mxu_dtype)

    x_item = x.dtype.itemsize
    w1_item = w1.dtype.itemsize
    w2_item = w2.dtype.itemsize
    out_item = jnp.dtype(out_dtype).itemsize

    # Sublane alignment for the row tile: 8 for 32-bit, 16 for 16-bit dtypes.
    sub = 8 if x_item >= 4 else 16

    cap = _vmem_capacity_bytes()
    vmem_budget = int(0.8 * cap)

    # Pad the output projection to full 128-lane width -> lane-dense stores.
    o_pad = _round_up(O, 128)
    w2_p = w2 if o_pad == O else jnp.pad(w2, ((0, 0), (0, o_pad - O)))
    b2_p = (b2 if o_pad == O else jnp.pad(b2, (0, o_pad - O))).reshape(1, o_pad)

    # Biases / LN params as (1, E) rows so in-kernel broadcasting stays 2-D.
    b1_2d = b1.reshape(1, E)
    gamma_2d = gamma.reshape(1, E)
    beta_2d = beta.reshape(1, E)

    # Decide whether W1 (+ padded W2) can stay fully resident in VMEM.
    resident_w_bytes = E * E * w1_item + E * o_pad * w2_item
    if k_stream is None:
        k_stream = resident_w_bytes > int(0.4 * cap)

    if k_stream:
        # K tile must be a multiple of 128 lanes for the x block.
        tile_k = max(128, (int(tile_k) // 128) * 128)
        tile_k = min(tile_k, _round_up(E, 128))
        k_pad = _round_up(E, tile_k)
    else:
        tile_k = E
        k_pad = E

    def vmem_est(tm):
        if k_stream:
            est = (2 * tm * tile_k * x_item          # x tile (double-buffered)
                   + 2 * tile_k * E * w1_item        # W1 K-slab (double-buffered)
                   + E * o_pad * w2_item             # W2 resident
                   + tm * E * 4                      # f32 accumulator scratch
                   + 2 * tm * o_pad * out_item       # out tile (double-buffered)
                   + 2 * tm * E * 4)                 # f32 epilogue temps
        else:
            est = (2 * tm * E * x_item
                   + E * E * w1_item
                   + E * o_pad * w2_item
                   + 2 * tm * o_pad * out_item
                   + 3 * tm * E * 4)
        est += (3 * E + o_pad) * 4                   # biases / LN params
        return est

    # Row tile: start tall (amortizes ~0.35 us/grid-step overhead; keeps streamed
    # W1 above the HBM roofline), then clamp to the row count, guarantee >= 2 row
    # blocks for v7x's two TensorCores, and finally fit the VMEM budget.
    tm = 512 if tile_m is None else max(sub, (int(tile_m) // sub) * sub)
    tm = min(tm, _round_up(max(N, 1), sub))
    if N > sub:
        tm = min(tm, _round_up(pl.cdiv(N, 2), sub))
    while tm > sub and vmem_est(tm) > vmem_budget:
        tm = max(sub, (tm // 2 // sub) * sub)
    tile_m = tm

    # Pad rows (and the K dim when streaming) so the grid covers the data exactly.
    n_pad = _round_up(max(N, 1), tile_m)
    pad_rows = n_pad - N
    pad_cols = k_pad - E
    if pad_rows or pad_cols:
        x = jnp.pad(x, ((0, pad_rows), (0, pad_cols)))
    w1_p = w1 if pad_cols == 0 else jnp.pad(w1, ((0, pad_cols), (0, 0)))

    vmem_limit = int(min(max(int(1.3 * vmem_est(tile_m)), 32 * 1024 * 1024),
                         vmem_budget))

    row_blocks = n_pad // tile_m
    w1_reads = row_blocks if k_stream else 1  # streamed W1 is re-read per row block
    cost = pl.CostEstimate(
        flops=int(2 * n_pad * k_pad * E + 2 * n_pad * E * o_pad),
        transcendentals=int(n_pad * E + n_pad),
        bytes_accessed=int(n_pad * k_pad * x_item
                           + w1_reads * k_pad * E * w1_item
                           + E * o_pad * w2_item
                           + (3 * E + o_pad) * 4
                           + n_pad * o_pad * out_item))

    const_buf = pl.Buffered(1)   # single-buffer grid-invariant (constant) blocks

    if not k_stream:
        grid = (row_blocks,)
        kernel = functools.partial(_resident_kernel,
                                   approximate_gelu=approximate_gelu)
        in_specs = [
            pl.BlockSpec((tile_m, E), lambda i: (i, 0)),                          # x rows
            pl.BlockSpec((E, E), lambda i: (0, 0), pipeline_mode=const_buf),      # W1
            pl.BlockSpec((1, E), lambda i: (0, 0), pipeline_mode=const_buf),      # b1
            pl.BlockSpec((1, E), lambda i: (0, 0), pipeline_mode=const_buf),      # gamma
            pl.BlockSpec((1, E), lambda i: (0, 0), pipeline_mode=const_buf),      # beta
            pl.BlockSpec((E, o_pad), lambda i: (0, 0), pipeline_mode=const_buf),  # W2
            pl.BlockSpec((1, o_pad), lambda i: (0, 0), pipeline_mode=const_buf),  # b2
        ]
        out_specs = pl.BlockSpec((tile_m, o_pad), lambda i: (i, 0))
        scratch_shapes = []
        dim_sem = ("parallel",)
    else:
        grid = (row_blocks, k_pad // tile_k)
        kernel = functools.partial(_kstream_kernel,
                                   approximate_gelu=approximate_gelu)
        in_specs = [
            pl.BlockSpec((tile_m, tile_k), lambda i, k: (i, k)),                     # x
            pl.BlockSpec((tile_k, E), lambda i, k: (k, 0)),                          # W1 K-slab
            pl.BlockSpec((1, E), lambda i, k: (0, 0), pipeline_mode=const_buf),      # b1
            pl.BlockSpec((1, E), lambda i, k: (0, 0), pipeline_mode=const_buf),      # gamma
            pl.BlockSpec((1, E), lambda i, k: (0, 0), pipeline_mode=const_buf),      # beta
            pl.BlockSpec((E, o_pad), lambda i, k: (0, 0), pipeline_mode=const_buf),  # W2
            pl.BlockSpec((1, o_pad), lambda i, k: (0, 0), pipeline_mode=const_buf),  # b2
        ]
        out_specs = pl.BlockSpec((tile_m, o_pad), lambda i, k: (i, 0))
        scratch_shapes = [pltpu.VMEM((tile_m, E), jnp.float32)]
        dim_sem = ("parallel", "arbitrary")

    out = pl.pallas_call(
        kernel,
        out_shape=jax.ShapeDtypeStruct((n_pad, o_pad), out_dtype),
        grid_spec=pltpu.PrefetchScalarGridSpec(
            num_scalar_prefetch=0,
            grid=grid,
            in_specs=in_specs,
            out_specs=out_specs,
            scratch_shapes=scratch_shapes,
        ),
        compiler_params=pltpu.CompilerParams(
            dimension_semantics=dim_sem,
            vmem_limit_bytes=vmem_limit),
        cost_estimate=cost,
    )(x, w1_p, b1_2d, gamma_2d, beta_2d, w2_p, b2_p)

    out = out[:N, :O]
    return out.reshape(*lead_shape, O)


def init_params(key, embed_dim, output_dim, dtype=jnp.float32):
    """Deterministic synthetic params matching the PyTorch module's shapes.

    PyTorch stores Linear weights as (out, in); we store the transposed (in, out)
    layout so the kernel does a plain x @ W.
    """
    k1, k2, k3, k4 = jax.random.split(key, 4)
    s1 = 1.0 / math.sqrt(embed_dim)
    return {
        "w1": jax.random.uniform(k1, (embed_dim, embed_dim), dtype, -s1, s1),
        "b1": jax.random.uniform(k2, (embed_dim,), dtype, -s1, s1),
        "gamma": jnp.ones((embed_dim,), dtype),
        "beta": jnp.zeros((embed_dim,), dtype),
        "w2": jax.random.uniform(k3, (embed_dim, output_dim), dtype, -s1, s1),
        "b2": jax.random.uniform(k4, (output_dim,), dtype, -s1, s1),
    }


def _reference(features, params):
    """Pure-JAX reference for sanity checking."""
    x = features.astype(jnp.float32)
    h = x @ params["w1"].astype(jnp.float32) + params["b1"].astype(jnp.float32)
    h = 0.5 * h * (1.0 + lax.erf(h / jnp.sqrt(jnp.float32(2.0))))
    mean = jnp.mean(h, axis=-1, keepdims=True)
    var = jnp.mean(jnp.square(h - mean), axis=-1, keepdims=True)
    hn = (h - mean) * lax.rsqrt(var + 1e-5)
    hn = hn * params["gamma"].astype(jnp.float32) + params["beta"].astype(jnp.float32)
    return (hn @ params["w2"].astype(jnp.float32)
            + params["b2"].astype(jnp.float32)).astype(features.dtype)


if __name__ == "__main__":
    key = jax.random.PRNGKey(0)
    k_feat, k_params, k_feat2, k_params2 = jax.random.split(key, 4)

    # 1) Exact f32 path, resident weights, small shapes.
    batch, seq, embed_dim, output_dim = 2, 8, 32, 8
    features = jax.random.normal(k_feat, (batch, seq, embed_dim), jnp.float32)
    params = init_params(k_params, embed_dim, output_dim)

    out = jax.block_until_ready(regression_head(features, params))
    ref = _reference(features, params)
    assert out.shape == (batch, seq, output_dim), out.shape
    assert jnp.allclose(out, ref, atol=1e-4, rtol=1e-4), \
        float(jnp.max(jnp.abs(out - ref)))

    # 2) bf16 MXU path (f32 accumulation) — looser tolerance.
    out_bf16 = jax.block_until_ready(
        regression_head(features, params, mxu_dtype=jnp.bfloat16))
    assert out_bf16.shape == (batch, seq, output_dim), out_bf16.shape
    assert jnp.allclose(out_bf16, ref, atol=5e-2, rtol=5e-2), \
        float(jnp.max(jnp.abs(out_bf16 - ref)))

    # 3) K-streaming path (forced here; auto-enables when W1 overflows VMEM).
    batch2, seq2, embed_dim2, output_dim2 = 2, 16, 256, 4
    features2 = jax.random.normal(k_feat2, (batch2, seq2, embed_dim2), jnp.float32)
    params2 = init_params(k_params2, embed_dim2, output_dim2)
    out_ks = jax.block_until_ready(
        regression_head(features2, params2, k_stream=True, tile_k=128))
    ref2 = _reference(features2, params2)
    assert out_ks.shape == (batch2, seq2, output_dim2), out_ks.shape
    assert jnp.allclose(out_ks, ref2, atol=1e-4, rtol=1e-4), \
        float(jnp.max(jnp.abs(out_ks - ref2)))

    print("KERNEL_OK")
</pallas_src>

<mosaic_0001>
module attributes {stable_mosaic.version = 11 : i64} {
  func.func @_resident_kernel(%arg0: i32, %arg1: memref<8x32xf32, #tpu.memory_space<vmem>>, %arg2: memref<32x32xf32, #tpu.memory_space<vmem>>, %arg3: memref<1x32xf32, #tpu.memory_space<vmem>>, %arg4: memref<1x32xf32, #tpu.memory_space<vmem>>, %arg5: memref<1x32xf32, #tpu.memory_space<vmem>>, %arg6: memref<32x128xf32, #tpu.memory_space<vmem>>, %arg7: memref<1x128xf32, #tpu.memory_space<vmem>>, %arg8: memref<8x128xf32, #tpu.memory_space<vmem>>) attributes {dimension_semantics = [#tpu.dimension_semantics<parallel>], iteration_bounds = array<i64: 2>, scalar_prefetch = 0 : i64, scratch_operands = 0 : i64, tpu.core_type = #tpu.core_type<tc>, window_params = [{transform_indices = @transform_0, window_bounds = array<i64: 8, 32>}, {pipeline_mode = #tpu.pipeline_mode<synchronous>, transform_indices = @transform_1, window_bounds = array<i64: 32, 32>}, {pipeline_mode = #tpu.pipeline_mode<synchronous>, transform_indices = @transform_2, window_bounds = array<i64: 1, 32>}, {pipeline_mode = #tpu.pipeline_mode<synchronous>, transform_indices = @transform_3, window_bounds = array<i64: 1, 32>}, {pipeline_mode = #tpu.pipeline_mode<synchronous>, transform_indices = @transform_4, window_bounds = array<i64: 1, 32>}, {pipeline_mode = #tpu.pipeline_mode<synchronous>, transform_indices = @transform_5, window_bounds = array<i64: 32, 128>}, {pipeline_mode = #tpu.pipeline_mode<synchronous>, transform_indices = @transform_6, window_bounds = array<i64: 1, 128>}, {transform_indices = @transform_7, window_bounds = array<i64: 8, 128>}]} {
    %c0 = arith.constant 0 : index
    %c0_0 = arith.constant 0 : index
    %0 = vector.load %arg1[%c0, %c0_0] : memref<8x32xf32, #tpu.memory_space<vmem>>, vector<8x32xf32>
    %c0_1 = arith.constant 0 : index
    %c0_2 = arith.constant 0 : index
    %1 = vector.load %arg2[%c0_1, %c0_2] : memref<32x32xf32, #tpu.memory_space<vmem>>, vector<32x32xf32>
    %cst = arith.constant dense<0.000000e+00> : vector<8x32xf32>
    %2 = tpu.matmul %0, %1, %cst {dimension_numbers = #tpu.dot_dimension_numbers<[1], [0], [0], [1], [0, 0, 1, 1], [], []>} : vector<8x32xf32>, vector<32x32xf32>, vector<8x32xf32> -> vector<8x32xf32>
    %c0_3 = arith.constant 0 : index
    %c0_4 = arith.constant 0 : index
    %3 = vector.load %arg3[%c0_3, %c0_4] : memref<1x32xf32, #tpu.memory_space<vmem>>, vector<1x32xf32>
    %4 = vector.broadcast %3 : vector<1x32xf32> to vector<8x32xf32>
    %5 = arith.addf %2, %4 : vector<8x32xf32>
    %c0_5 = arith.constant 0 : index
    %c0_6 = arith.constant 0 : index
    %6 = vector.load %arg4[%c0_5, %c0_6] : memref<1x32xf32, #tpu.memory_space<vmem>>, vector<1x32xf32>
    %c0_7 = arith.constant 0 : index
    %c0_8 = arith.constant 0 : index
    %7 = vector.load %arg5[%c0_7, %c0_8] : memref<1x32xf32, #tpu.memory_space<vmem>>, vector<1x32xf32>
    %c0_9 = arith.constant 0 : index
    %c0_10 = arith.constant 0 : index
    %8 = vector.load %arg6[%c0_9, %c0_10] : memref<32x128xf32, #tpu.memory_space<vmem>>, vector<32x128xf32>
    %c0_11 = arith.constant 0 : index
    %c0_12 = arith.constant 0 : index
    %9 = vector.load %arg7[%c0_11, %c0_12] : memref<1x128xf32, #tpu.memory_space<vmem>>, vector<1x128xf32>
    %cst_13 = arith.constant 5.000000e-01 : f32
    %10 = vector.broadcast %cst_13 : f32 to vector<8x32xf32>
    %11 = arith.mulf %10, %5 : vector<8x32xf32>
    %cst_14 = arith.constant 0.707106769 : f32
    %12 = vector.broadcast %cst_14 : f32 to vector<8x32xf32>
    %13 = arith.mulf %5, %12 : vector<8x32xf32>
    %14 = math.erf %13 : vector<8x32xf32>
    %cst_15 = arith.constant 1.000000e+00 : f32
    %15 = vector.broadcast %cst_15 : f32 to vector<8x32xf32>
    %16 = arith.addf %15, %14 : vector<8x32xf32>
    %17 = arith.mulf %11, %16 : vector<8x32xf32>
    %cst_16 = arith.constant dense<0.000000e+00> : vector<8xf32>
    %18 = vector.multi_reduction <add>, %17, %cst_16 [1] : vector<8x32xf32> to vector<8xf32>
    %19 = vector.shape_cast %18 : vector<8xf32> to vector<8x1xf32>
    %cst_17 = arith.constant 3.200000e+01 : f32
    %20 = vector.broadcast %cst_17 : f32 to vector<8x1xf32>
    %21 = arith.divf %19, %20 : vector<8x1xf32>
    %22 = arith.mulf %17, %17 : vector<8x32xf32>
    %cst_18 = arith.constant dense<0.000000e+00> : vector<8xf32>
    %23 = vector.multi_reduction <add>, %22, %cst_18 [1] : vector<8x32xf32> to vector<8xf32>
    %24 = vector.shape_cast %23 : vector<8xf32> to vector<8x1xf32>
    %cst_19 = arith.constant 3.200000e+01 : f32
    %25 = vector.broadcast %cst_19 : f32 to vector<8x1xf32>
    %26 = arith.divf %24, %25 : vector<8x1xf32>
    %27 = arith.mulf %21, %21 : vector<8x1xf32>
    %28 = arith.subf %26, %27 : vector<8x1xf32>
    %cst_20 = arith.constant 0.000000e+00 : f32
    %29 = vector.broadcast %cst_20 : f32 to vector<8x1xf32>
    %30 = arith.maximumf %28, %29 : vector<8x1xf32>
    %31 = vector.broadcast %21 : vector<8x1xf32> to vector<8x32xf32>
    %32 = arith.subf %17, %31 : vector<8x32xf32>
    %cst_21 = arith.constant 9.99999974E-6 : f32
    %33 = vector.broadcast %cst_21 : f32 to vector<8x1xf32>
    %34 = arith.addf %30, %33 : vector<8x1xf32>
    %35 = math.rsqrt %34 : vector<8x1xf32>
    %36 = vector.broadcast %35 : vector<8x1xf32> to vector<8x32xf32>
    %37 = arith.mulf %32, %36 : vector<8x32xf32>
    %38 = vector.broadcast %6 : vector<1x32xf32> to vector<8x32xf32>
    %39 = arith.mulf %37, %38 : vector<8x32xf32>
    %40 = vector.broadcast %7 : vector<1x32xf32> to vector<8x32xf32>
    %41 = arith.addf %39, %40 : vector<8x32xf32>
    %cst_22 = arith.constant dense<0.000000e+00> : vector<8x128xf32>
    %42 = tpu.matmul %41, %8, %cst_22 {dimension_numbers = #tpu.dot_dimension_numbers<[1], [0], [0], [1], [0, 0, 1, 1], [], []>} : vector<8x32xf32>, vector<32x128xf32>, vector<8x128xf32> -> vector<8x128xf32>
    %43 = vector.broadcast %9 : vector<1x128xf32> to vector<8x128xf32>
    %44 = arith.addf %42, %43 : vector<8x128xf32>
    %c0_23 = arith.constant 0 : index
    %c0_24 = arith.constant 0 : index
    %45 = vector.load %arg8[%c0_23, %c0_24] : memref<8x128xf32, #tpu.memory_space<vmem>>, vector<8x128xf32>
    tpu.vector_store %arg8[%c0_23, %c0_24], %44 {strides = array<i32>} : memref<8x128xf32, #tpu.memory_space<vmem>>, vector<8x128xf32>,
    return
  }
  func.func @transform_0(%arg0: i32) -> (i32, i32) {
    %c0_i32 = arith.constant 0 : i32
    %c0_i32_0 = arith.constant 0 : i32
    return %arg0, %c0_i32 : i32, i32
  }
  func.func @transform_1(%arg0: i32) -> (i32, i32) {
    %c0_i32 = arith.constant 0 : i32
    %c0_i32_0 = arith.constant 0 : i32
    %c0_i32_1 = arith.constant 0 : i32
    return %c0_i32, %c0_i32_0 : i32, i32
  }
  func.func @transform_2(%arg0: i32) -> (i32, i32) {
    %c0_i32 = arith.constant 0 : i32
    %c0_i32_0 = arith.constant 0 : i32
    %c0_i32_1 = arith.constant 0 : i32
    return %c0_i32, %c0_i32_0 : i32, i32
  }
  func.func @transform_3(%arg0: i32) -> (i32, i32) {
    %c0_i32 = arith.constant 0 : i32
    %c0_i32_0 = arith.constant 0 : i32
    %c0_i32_1 = arith.constant 0 : i32
    return %c0_i32, %c0_i32_0 : i32, i32
  }
  func.func @transform_4(%arg0: i32) -> (i32, i32) {
    %c0_i32 = arith.constant 0 : i32
    %c0_i32_0 = arith.constant 0 : i32
    %c0_i32_1 = arith.constant 0 : i32
    return %c0_i32, %c0_i32_0 : i32, i32
  }
  func.func @transform_5(%arg0: i32) -> (i32, i32) {
    %c0_i32 = arith.constant 0 : i32
    %c0_i32_0 = arith.constant 0 : i32
    %c0_i32_1 = arith.constant 0 : i32
    return %c0_i32, %c0_i32_0 : i32, i32
  }
  func.func @transform_6(%arg0: i32) -> (i32, i32) {
    %c0_i32 = arith.constant 0 : i32
    %c0_i32_0 = arith.constant 0 : i32
    %c0_i32_1 = arith.constant 0 : i32
    return %c0_i32, %c0_i32_0 : i32, i32
  }
  func.func @transform_7(%arg0: i32) -> (i32, i32) {
    %c0_i32 = arith.constant 0 : i32
    %c0_i32_0 = arith.constant 0 : i32
    return %arg0, %c0_i32 : i32, i32
  }
}

</mosaic_0001>

<llo_original>
// kernel: tpu_custom_call.1
$region0: #{tpu_custom_call.1}
  #allocation0 [shape = 'u32[]', space=smem, size = 0x4, offset = 0x4, fixed_abs, tag = 'smem constant byte address 0x4 - core index']
  #allocation1 [shape = 'u32[144,128]{1,0:T(1,128)}', space=vmem, size = 0x12000, scoped, tag = 'internal scratch']
  %s0 = inlined_call_operand.hbm [shape: f32[16,32], index: 0, kind: input, shape index: {}]
  %s1 = inlined_call_operand.hbm [shape: f32[32,32], index: 1, kind: input, shape index: {}]
  %s2 = inlined_call_operand.vmem [shape: f32[1,32], index: 2, kind: input, shape index: {}]
  %s3 = inlined_call_operand.vmem [shape: f32[1,32], index: 3, kind: input, shape index: {}]
  %s4 = inlined_call_operand.vmem [shape: f32[1,32], index: 4, kind: input, shape index: {}]
  %s5 = inlined_call_operand.hbm [shape: f32[32,128], index: 5, kind: input, shape index: {}]
  %s6 = inlined_call_operand.vmem [shape: f32[1,128], index: 6, kind: input, shape index: {}]
  %s7 = inlined_call_operand.hbm [shape: f32[16,128], index: 7, kind: output, shape index: {}]
  %s8 = sld [smem:[#allocation0]]
  $region73: #{tpu_custom_call.1} parent=0
    _
  %s10 = ssub.s32 1, %s8
  %s11 = scalar_select 0, %s10, %s8
  $region1: #{tpu_custom_call.1} parent=0
    #allocation2 [shape = 'u8[8192]{0}', space=vmem, size = 0x2000, scoped, tag = 'input window, operand 0']
    #allocation3 [shape = 's32[2]{0}', space=sflag, size = 0x8, scoped, tag = 'scoped memory for tpu_custom_call.1']
    #allocation4 [shape = 's32[2]{0}', space=sflag, size = 0x8, scoped, tag = 'scoped memory for tpu_custom_call.1']
    #allocation5 [shape = 'u8[16384]{0}', space=vmem, size = 0x4000, scoped, tag = 'input window, operand 1, single buffered']
    #allocation6 [shape = 's32[1]{0}', space=sflag, size = 0x4, scoped, tag = 'scoped memory for tpu_custom_call.1']
    #allocation7 [shape = 'u8[16384]{0}', space=vmem, size = 0x4000, scoped, tag = 'input window, operand 5, single buffered']
    #allocation8 [shape = 'u8[8192]{0}', space=vmem, size = 0x2000, scoped, tag = 'output window, operand 0']
    %12 = vsyncpa [#allocation3], 0
    %s13 = scalar_lea.sflag [#allocation3], 1
    %14 = vsyncpa %s13, 0
    %15 = vsyncpa [#allocation6], 0
    %16 = vsyncpa [#allocation4], 0
    %s17 = scalar_lea.sflag [#allocation4], 1
    %18 = vsyncpa %s17, 0
    loop: start=0, step=1, limit=4
    $region2: #{tpu_custom_call.1} parent=1 // loop_pre_header
      _
    $region3: #{tpu_custom_call.1} parent=1 // loop_header
      %s20 = sphi 0, %s24
      %p21 = scmp.ge.s32.totalorder %s20, 4
      %s30 = sphi 0, %s32
      %s33 = sphi 0, %s30
      %s34 = sphi 0, %s33
      %s50 = sphi 0, %s34
      %s54 = sphi 0, %s54
      %s56 = sphi 0, %s54
      %s57 = sphi 0, %s56
      %s71 = sphi 0, %s57
      %s75 = sphi 0, %s75
      %s77 = sphi 0, %s75
      %s78 = sphi 0, %s77
      %s92 = sphi 0, %s78
      %s96 = sphi 0, %s96
      %s98 = sphi 0, %s96
      %s99 = sphi 0, %s98
      %s113 = sphi 0, %s99
      %s117 = sphi 0, %s117
      %s119 = sphi 0, %s117
      %s120 = sphi 0, %s119
      %s134 = sphi 0, %s120
      %s138 = sphi 0, %s138
      %s140 = sphi 0, %s138
      %s141 = sphi 0, %s140
      %s155 = sphi 0, %s141
      %s159 = sphi 0, %s159
      %s161 = sphi 0, %s159
      %s162 = sphi 0, %s161
      %s176 = sphi 0, %s162
      %s182 = sphi 0, %s184
      %s185 = sphi 0, %s182
      %s186 = sphi 0, %s185
      %s202 = sphi 0, %s186
    $region4: #{tpu_custom_call.1} parent=1 // loop_header_branch
      %23 = sbr.rel (%p21) target = $region8
    $region5: #{tpu_custom_call.1} parent=1 // loop_body
      %s25 = ssub.s32 %s20, 1
      %s26 = ssub.s32 %s20, 2
      %s27 = sadd.s32 %s20, 1
      %s28 = ssub.s32 %s20, %s27
      %p29 = scmp.eq.s32.totalorder %s28, 0
      %s31 = sadd.s32 %s30, 1
      %s32 = scalar_select %p29, %s30, %s31
      %p35 = pneg %p29
      %p36 = scmp.eq.s32.totalorder %s20, 1
      %p37 = por %p35, %p36
      %p38 = scmp.ne.s32.totalorder %s30, %s33
      %p39 = scmp.eq.s32.totalorder %s20, 0
      %p40 = por %p38, %p39
      %p41 = scmp.ne.s32.totalorder %s30, %s33
      %p42 = scmp.eq.s32.totalorder %s25, 1
      %p43 = por %p41, %p42
      %p44 = scmp.ne.s32.totalorder %s33, %s34
      %p45 = scmp.eq.s32.totalorder %s25, 0
      %p46 = por %p44, %p45
      %p47 = scmp.ne.s32.totalorder %s33, %s34
      %p48 = scmp.eq.s32.totalorder %s26, 1
      %p49 = por %p47, %p48
      %p51 = scmp.ne.s32.totalorder %s34, %s50
      %p52 = scmp.eq.s32.totalorder %s26, 0
      %p53 = por %p51, %p52
      %s55 = sadd.s32 %s54, 1
      %p58 = scmp.eq.s32.totalorder %s20, 1
      %p59 = scmp.ne.s32.totalorder %s54, %s56
      %p60 = scmp.eq.s32.totalorder %s20, 0
      %p61 = por %p59, %p60
      %p62 = scmp.ne.s32.totalorder %s54, %s56
      %p63 = scmp.eq.s32.totalorder %s25, 1
      %p64 = por %p62, %p63
      %p65 = scmp.ne.s32.totalorder %s56, %s57
      %p66 = scmp.eq.s32.totalorder %s25, 0
      %p67 = por %p65, %p66
      %p68 = scmp.ne.s32.totalorder %s56, %s57
      %p69 = scmp.eq.s32.totalorder %s26, 1
      %p70 = por %p68, %p69
      %p72 = scmp.ne.s32.totalorder %s57, %s71
      %p73 = scmp.eq.s32.totalorder %s26, 0
      %p74 = por %p72, %p73
      %s76 = sadd.s32 %s75, 1
      %p79 = scmp.eq.s32.totalorder %s20, 1
      %p80 = scmp.ne.s32.totalorder %s75, %s77
      %p81 = scmp.eq.s32.totalorder %s20, 0
      %p82 = por %p80, %p81
      %p83 = scmp.ne.s32.totalorder %s75, %s77
      %p84 = scmp.eq.s32.totalorder %s25, 1
      %p85 = por %p83, %p84
      %p86 = scmp.ne.s32.totalorder %s77, %s78
      %p87 = scmp.eq.s32.totalorder %s25, 0
      %p88 = por %p86, %p87
      %p89 = scmp.ne.s32.totalorder %s77, %s78
      %p90 = scmp.eq.s32.totalorder %s26, 1
      %p91 = por %p89, %p90
      %p93 = scmp.ne.s32.totalorder %s78, %s92
      %p94 = scmp.eq.s32.totalorder %s26, 0
      %p95 = por %p93, %p94
      %s97 = sadd.s32 %s96, 1
      %p100 = scmp.eq.s32.totalorder %s20, 1
      %p101 = scmp.ne.s32.totalorder %s96, %s98
      %p102 = scmp.eq.s32.totalorder %s20, 0
      %p103 = por %p101, %p102
      %p104 = scmp.ne.s32.totalorder %s96, %s98
      %p105 = scmp.eq.s32.totalorder %s25, 1
      %p106 = por %p104, %p105
      %p107 = scmp.ne.s32.totalorder %s98, %s99
      %p108 = scmp.eq.s32.totalorder %s25, 0
      %p109 = por %p107, %p108
      %p110 = scmp.ne.s32.totalorder %s98, %s99
      %p111 = scmp.eq.s32.totalorder %s26, 1
      %p112 = por %p110, %p111
      %p114 = scmp.ne.s32.totalorder %s99, %s113
      %p115 = scmp.eq.s32.totalorder %s26, 0
      %p116 = por %p114, %p115
      %s118 = sadd.s32 %s117, 1
      %p121 = scmp.eq.s32.totalorder %s20, 1
      %p122 = scmp.ne.s32.totalorder %s117, %s119
      %p123 = scmp.eq.s32.totalorder %s20, 0
      %p124 = por %p122, %p123
      %p125 = scmp.ne.s32.totalorder %s117, %s119
      %p126 = scmp.eq.s32.totalorder %s25, 1
      %p127 = por %p125, %p126
      %p128 = scmp.ne.s32.totalorder %s119, %s120
      %p129 = scmp.eq.s32.totalorder %s25, 0
      %p130 = por %p128, %p129
      %p131 = scmp.ne.s32.totalorder %s119, %s120
      %p132 = scmp.eq.s32.totalorder %s26, 1
      %p133 = por %p131, %p132
      %p135 = scmp.ne.s32.totalorder %s120, %s134
      %p136 = scmp.eq.s32.totalorder %s26, 0
      %p137 = por %p135, %p136
      %s139 = sadd.s32 %s138, 1
      %p142 = scmp.eq.s32.totalorder %s20, 1
      %p143 = scmp.ne.s32.totalorder %s138, %s140
      %p144 = scmp.eq.s32.totalorder %s20, 0
      %p145 = por %p143, %p144
      %p146 = scmp.ne.s32.totalorder %s138, %s140
      %p147 = scmp.eq.s32.totalorder %s25, 1
      %p148 = por %p146, %p147
      %p149 = scmp.ne.s32.totalorder %s140, %s141
      %p150 = scmp.eq.s32.totalorder %s25, 0
      %p151 = por %p149, %p150
      %p152 = scmp.ne.s32.totalorder %s140, %s141
      %p153 = scmp.eq.s32.totalorder %s26, 1
      %p154 = por %p152, %p153
      %p156 = scmp.ne.s32.totalorder %s141, %s155
      %p157 = scmp.eq.s32.totalorder %s26, 0
      %p158 = por %p156, %p157
      %s160 = sadd.s32 %s159, 1
      %p163 = scmp.eq.s32.totalorder %s20, 1
      %p164 = scmp.ne.s32.totalorder %s159, %s161
      %p165 = scmp.eq.s32.totalorder %s20, 0
      %p166 = por %p164, %p165
      %p167 = scmp.ne.s32.totalorder %s159, %s161
      %p168 = scmp.eq.s32.totalorder %s25, 1
      %p169 = por %p167, %p168
      %p170 = scmp.ne.s32.totalorder %s161, %s162
      %p171 = scmp.eq.s32.totalorder %s25, 0
      %p172 = por %p170, %p171
      %p173 = scmp.ne.s32.totalorder %s161, %s162
      %p174 = scmp.eq.s32.totalorder %s26, 1
      %p175 = por %p173, %p174
      %p177 = scmp.ne.s32.totalorder %s162, %s176
      %p178 = scmp.eq.s32.totalorder %s26, 0
      %p179 = por %p177, %p178
      %s180 = ssub.s32 %s20, %s27
      %p181 = scmp.eq.s32.totalorder %s180, 0
      %s183 = sadd.s32 %s182, 1
      %s184 = scalar_select %p181, %s182, %s183
      %p187 = pneg %p181
      %p188 = scmp.eq.s32.totalorder %s20, 1
      %p189 = por %p187, %p188
      %p190 = scmp.ne.s32.totalorder %s182, %s185
      %p191 = scmp.eq.s32.totalorder %s20, 0
      %p192 = por %p190, %p191
      %p193 = scmp.ne.s32.totalorder %s182, %s185
      %p194 = scmp.eq.s32.totalorder %s25, 1
      %p195 = por %p193, %p194
      %p196 = scmp.ne.s32.totalorder %s185, %s186
      %p197 = scmp.eq.s32.totalorder %s25, 0
      %p198 = por %p196, %p197
      %p199 = scmp.ne.s32.totalorder %s185, %s186
      %p200 = scmp.eq.s32.totalorder %s26, 1
      %p201 = por %p199, %p200
      %p203 = scmp.ne.s32.totalorder %s186, %s202
      %p204 = scmp.eq.s32.totalorder %s26, 0
      %p205 = por %p203, %p204
      %p206 = scmp.le.s32.totalorder 1, %s20
      %p207 = scmp.lt.s32.totalorder %s20, 3
      %p208 = pnand %p206, %p207
      %p209 = pneg %p208
      // Predicated region
      $region9: #{tpu_custom_call.1} parent=5 // pred_check
        _
      $region10: #{tpu_custom_call.1} parent=5 // pred_check_branch
        %211 = sbr.rel (%p208) target = $region12
      $region11: #{tpu_custom_call.1} parent=5 // pred_region
        %s212 = ssub.s32 %s20, 1
        // Predicated region
        $region13: #{tpu_custom_call.1} parent=11 // pred_check
          %p213 = pneg %p67
        $region14: #{tpu_custom_call.1} parent=11 // pred_check_branch
          %215 = sbr.rel (%p213) target = $region16
        $region15: #{tpu_custom_call.1} parent=11 // pred_region
          %s217 = ssub.s32 512, 512
          %218 = vsyncadd [#allocation6], %s217
          %s219 = sshll.u32 [#allocation5], 4
          %s220 = int_to_ptr.vmem [resolvable:$true] %s219
          %225 = dma.hbm_to_vmem [thread:$0]  %s1, 512, %s220, [#allocation6], 128, 128, 8
        $region16: #{tpu_custom_call.1} parent=11 // pred_fallthru
          _
        // Predicated region
        $region17: #{tpu_custom_call.1} parent=11 // pred_check
          %p226 = pneg %p88
        $region18: #{tpu_custom_call.1} parent=11 // pred_check_branch
          %228 = sbr.rel (%p226) target = $region20
        $region19: #{tpu_custom_call.1} parent=11 // pred_region
          _
        $region20: #{tpu_custom_call.1} parent=11 // pred_fallthru
          _
        // Predicated region
        $region21: #{tpu_custom_call.1} parent=11 // pred_check
          %p229 = pneg %p109
        $region22: #{tpu_custom_call.1} parent=11 // pred_check_branch
          %231 = sbr.rel (%p229) target = $region24
        $region23: #{tpu_custom_call.1} parent=11 // pred_region
          _
        $region24: #{tpu_custom_call.1} parent=11 // pred_fallthru
          _
        // Predicated region
        $region25: #{tpu_custom_call.1} parent=11 // pred_check
          %p232 = pneg %p130
        $region26: #{tpu_custom_call.1} parent=11 // pred_check_branch
          %234 = sbr.rel (%p232) target = $region28
        $region27: #{tpu_custom_call.1} parent=11 // pred_region
          _
        $region28: #{tpu_custom_call.1} parent=11 // pred_fallthru
          _
        // Predicated region
        $region29: #{tpu_custom_call.1} parent=11 // pred_check
          %p235 = pneg %p151
        $region30: #{tpu_custom_call.1} parent=11 // pred_check_branch
          %237 = sbr.rel (%p235) target = $region32
        $region31: #{tpu_custom_call.1} parent=11 // pred_region
          %s239 = ssub.s32 512, 512
          %240 = vsyncadd [#allocation6], %s239
          %s241 = sshll.u32 [#allocation7], 4
          %s242 = int_to_ptr.vmem [resolvable:$true] %s241
          %247 = dma.hbm_to_vmem [thread:$0]  %s5, 512, %s242, [#allocation6], 128, 128, 8
        $region32: #{tpu_custom_call.1} parent=11 // pred_fallthru
          _
        // Predicated region
        $region33: #{tpu_custom_call.1} parent=11 // pred_check
          %p248 = pneg %p172
        $region34: #{tpu_custom_call.1} parent=11 // pred_check_branch
          %250 = sbr.rel (%p248) target = $region36
        $region35: #{tpu_custom_call.1} parent=11 // pred_region
          _
        $region36: #{tpu_custom_call.1} parent=11 // pred_fallthru
          _
      $region12: #{tpu_custom_call.1} parent=5 // pred_fallthru
        _
      %p251 = scmp.lt.s32.totalorder %s20, 2
      // Predicated region
      $region37: #{tpu_custom_call.1} parent=5 // pred_check
        %p252 = pneg %p251
      $region38: #{tpu_custom_call.1} parent=5 // pred_check_branch
        %254 = sbr.rel (%p252) target = $region40
      $region39: #{tpu_custom_call.1} parent=5 // pred_region
        // Predicated region
        $region41: #{tpu_custom_call.1} parent=39 // pred_check
          %p255 = pneg %p40
        $region42: #{tpu_custom_call.1} parent=39 // pred_check_branch
          %257 = sbr.rel (%p255) target = $region44
        $region43: #{tpu_custom_call.1} parent=39 // pred_region
          %s258 = sand.u32 %s30, 1
          %s259 = scalar_lea.sflag [#allocation3], %s258
          %s260 = sand.u32 %s30, 1
          %s261 = smul.addr %s260, 8
          %s262 = scalar_lea.vmem [#allocation2], %s261
          %s264 = ssub.s32 128, 128
          %265 = vsyncadd %s259, %s264
          %s266 = smul.addr %s20, 128
          %s267 = scalar_lea.hbm %s0, %s266
          %s269 = sshll.u32 %s262, 4
          %s270 = int_to_ptr.vmem [resolvable:$true] %s269
          %272 = dma.hbm_to_vmem [thread:$0]  %s267, 128, %s270, %s259
        $region44: #{tpu_custom_call.1} parent=39 // pred_fallthru
          _
      $region40: #{tpu_custom_call.1} parent=5 // pred_fallthru
        _
      %p273 = scmp.le.s32.totalorder 1, %s20
      %p274 = scmp.lt.s32.totalorder %s20, 3
      %p275 = pnand %p273, %p274
      %p276 = pneg %p275
      // Predicated region
      $region45: #{tpu_custom_call.1} parent=5 // pred_check
        _
      $region46: #{tpu_custom_call.1} parent=5 // pred_check_branch
        %278 = sbr.rel (%p275) target = $region48
      $region47: #{tpu_custom_call.1} parent=5 // pred_region
        %s279 = ssub.s32 %s20, 1
        %s280 = sand.u32 %s33, 1
        %s281 = scalar_lea.sflag [#allocation3], %s280
        %s282 = sand.u32 %s33, 1
        %s283 = smul.addr %s282, 8
        %s284 = scalar_lea.vmem [#allocation2], %s283
        // Predicated region
        $region49: #{tpu_custom_call.1} parent=47 // pred_check
          %p285 = pneg %p46
        $region50: #{tpu_custom_call.1} parent=47 // pred_check_branch
          %287 = sbr.rel (%p285) target = $region52
        $region51: #{tpu_custom_call.1} parent=47 // pred_region
          %288 = dma.done %s281, 128
        $region52: #{tpu_custom_call.1} parent=47 // pred_fallthru
          _
        // Predicated region
        $region53: #{tpu_custom_call.1} parent=47 // pred_check
          %p289 = pneg %p67
        $region54: #{tpu_custom_call.1} parent=47 // pred_check_branch
          %291 = sbr.rel (%p289) target = $region56
        $region55: #{tpu_custom_call.1} parent=47 // pred_region
          %292 = dma.done [#allocation6], 512
        $region56: #{tpu_custom_call.1} parent=47 // pred_fallthru
          _
        // Predicated region
        $region57: #{tpu_custom_call.1} parent=47 // pred_check
          %p293 = pneg %p151
        $region58: #{tpu_custom_call.1} parent=47 // pred_check_branch
          %295 = sbr.rel (%p293) target = $region60
        $region59: #{tpu_custom_call.1} parent=47 // pred_region
          %296 = dma.done [#allocation6], 512
        $region60: #{tpu_custom_call.1} parent=47 // pred_fallthru
          _
        %s297 = sand.u32 %s33, 1
        %s298 = scalar_lea.sflag [#allocation3], %s297
        %s299 = sand.u32 %s33, 1
        %s300 = smul.addr %s299, 8
        %s301 = scalar_lea.vmem [#allocation2], %s300
        %p302 = pneg %p46
        %p303 = pneg %p43
        %p304 = pneg %p67
        %p305 = pneg %p64
        %p306 = pneg %p88
        %p307 = pneg %p85
        %p308 = pneg %p109
        %p309 = pneg %p106
        %p310 = pneg %p130
        %p311 = pneg %p127
        %p312 = pneg %p151
        %p313 = pneg %p148
        %p314 = pneg %p172
        %p315 = pneg %p169
        %p316 = pneg %p198
        %p317 = pneg %p195
        %s318 = sand.u32 %s185, 1
        %s319 = scalar_lea.sflag [#allocation4], %s318
        %s320 = sand.u32 %s185, 1
        %s321 = smul.addr %s320, 8
        %s322 = scalar_lea.vmem [#allocation8], %s321
        %v323 = vld [vmem:[%s284] sm:$0xff]
        %v324 = vld [vmem:[#allocation5] sm:$0xff]
        %v325 = vld [vmem:[#allocation5 + $0x8] sm:$0xff]
        %v326 = vld [vmem:[#allocation5 + $0x10] sm:$0xff]
        %v327 = vld [vmem:[#allocation5 + $0x18] sm:$0xff]
        %v328 = vld [vmem:[%s2] sm:$0x1]
        %v330 = vlaneseq
        %v331 = vshrl.u32 %v330, 7
        %v332 = vsub.s32 0, %v331
        %v333 = vrot.slane %v328, %v332
        %vm335 = vcmask 261120
        %v337 = vsel %vm335, %v323, 0
        %339 = vmatprep.subr.mxu0 0.0
        %340 = vmatpush1.msra.mxu0 %v324
        %341 = vmatprep.subr.mxu0 0.0
        %342 = vmatpush1.msra.mxu0 %v325
        %343 = vmatprep.subr.mxu0 0.0
        %344 = vmatpush1.msra.mxu0 %v326
        %345 = vmatprep.subr.mxu0 0.0
        %346 = vmatpush1.msra.mxu0 %v327
        %347 = vmatprep.subr.mxu0 0.0
        %348 = vmatpush1.msra.mxu0 0.0
        %349 = vmatprep.subr.mxu0 0.0
        %350 = vmatpush1.msra.mxu0 0.0
        %351 = vmatprep.subr.mxu0 0.0
        %352 = vmatpush1.msra.mxu0 0.0
        %353 = vmatprep.subr.mxu0 0.0
        %354 = vmatpush1.msra.mxu0 0.0
        %355 = vmatprep.subr.mxu0 0.0
        %356 = vmatpush1.msra.mxu0 0.0
        %357 = vmatprep.subr.mxu0 0.0
        %358 = vmatpush1.msra.mxu0 0.0
        %359 = vmatprep.subr.mxu0 0.0
        %360 = vmatpush1.msra.mxu0 0.0
        %361 = vmatprep.subr.mxu0 0.0
        %362 = vmatpush1.msra.mxu0 0.0
        %363 = vmatprep.subr.mxu0 0.0
        %364 = vmatpush1.msra.mxu0 0.0
        %365 = vmatprep.subr.mxu0 0.0
        %366 = vmatpush1.msra.mxu0 0.0
        %367 = vmatprep.subr.mxu0 0.0
        %368 = vmatpush1.msra.mxu0 0.0
        %369 = vmatprep.subr.mxu0 0.0
        %370 = vmatpush1.msra.mxu0 0.0
        %371 = vmatprep.subr.mxu0 0.0
        %372 = vmatpush1.msra.mxu0 0.0
        %373 = vmatprep.subr.mxu0 0.0
        %374 = vmatpush1.msra.mxu0 0.0
        %375 = vmatprep.subr.mxu0 0.0
        %376 = vmatpush1.msra.mxu0 0.0
        %377 = vmatprep.subr.mxu0 0.0
        %378 = vmatpush1.msra.mxu0 0.0
        %379 = vmatprep.subr.mxu0 0.0
        %380 = vmatpush1.msra.mxu0 0.0
        %381 = vmatprep.subr.mxu0 0.0
        %382 = vmatpush1.msra.mxu0 0.0
        %383 = vmatprep.subr.mxu0 0.0
        %384 = vmatpush1.msra.mxu0 0.0
        %385 = vmatprep.subr.mxu0 0.0
        %386 = vmatpush1.msra.mxu0 0.0
        %387 = vmatprep.subr.mxu0 0.0
        %388 = vmatpush1.msra.mxu0 0.0
        %389 = vmatprep.subr.mxu0 0.0
        %390 = vmatpush1.msra.mxu0 0.0
        %391 = vmatprep.subr.mxu0 0.0
        %392 = vmatpush1.msra.mxu0 0.0
        %393 = vmatprep.subr.mxu0 0.0
        %394 = vmatpush1.msra.mxu0 0.0
        %395 = vmatprep.subr.mxu0 0.0
        %396 = vmatpush1.msra.mxu0 0.0
        %397 = vmatprep.subr.mxu0 0.0
        %398 = vmatpush1.msra.mxu0 0.0
        %399 = vmatprep.subr.mxu0 0.0
        %400 = vmatpush1.msra.mxu0 0.0
        %401 = vmatprep.subr.mxu0 0.0
        %402 = vmatpush1.msra.mxu0 0.0
        %403 = vmatprep.mubr.f32.mxu0 0.0
        %404 = vmatmul.mubr.f32.gmra.mrb[0].mxu0 %v337
        %v405 = vpop.f32.mrb[0].mxu0
        %v406 = vadd.f32 %v333, %v405
        %v407 = vpop.f32.mrb[0].mxu0
        %408 = vdwg.mxu0
        %v409 = vld [vmem:[%s3] sm:$0x1]
        %v410 = vld [vmem:[%s4] sm:$0x1]
        %v411 = vld [vmem:[#allocation7] sm:$0xff]
        %v412 = vld [vmem:[#allocation7 + $0x8] sm:$0xff]
        %v413 = vld [vmem:[#allocation7 + $0x10] sm:$0xff]
        %v414 = vld [vmem:[#allocation7 + $0x18] sm:$0xff]
        %v415 = vld [vmem:[%s6] sm:$0x1]
        %v416 = vmul.f32 %v406, 0.5
        %v417 = vmul.f32 %v406, 0.70710677
        %v418 = verf.f32.pop %v417
        %v419 = vadd.f32 %v418, 1.0
        %v420 = vmul.f32 %v416, %v419
        %v421 = vsel %vm335, %v420, 0.0
        %422 = vadd.xlane.f32.xlu0 %v421
        %v423 = vpop.xlane.xlu0 %422
        %v424 = vrcp.pop 32.0
        %v425 = vmul.f32 %v423, %v424
        %v426 = vmul.f32 %v420, %v420
        %v427 = vsel %vm335, %v426, 0.0
        %428 = vadd.xlane.f32.xlu0 %v427
        %v429 = vpop.xlane.xlu0 %428
        %v430 = vmul.f32 %v429, %v424
        %v431 = vmul.f32 %v425, %v425
        %v432 = vsub.f32 %v430, %v431
        %v433 = vmax.f32 %v432, 0.0
        %v434 = vsub.f32 %v420, %v425
        %v435 = vadd.f32 %v433, 1e-05
        %v436 = vrsqrt.pop %v435
        %v437 = vmul.f32 %v434, %v436
        %v439 = vlaneseq
        %v440 = vshrl.u32 %v439, 7
        %v441 = vsub.s32 0, %v440
        %v442 = vrot.slane %v409, %v441
        %v444 = vmul.f32 %v437, %v442
        %v446 = vlaneseq
        %v447 = vshrl.u32 %v446, 7
        %v448 = vsub.s32 0, %v447
        %v449 = vrot.slane %v410, %v448
        %v451 = vadd.f32 %v444, %v449
        %v453 = vlaneseq
        %v454 = vshrl.u32 %v453, 7
        %v455 = vsub.s32 0, %v454
        %v456 = vrot.slane %v415, %v455
        %v459 = vsel %vm335, %v451, 0
        %461 = vmatprep.subr.mxu0 0.0
        %462 = vmatpush1.msra.mxu0 %v411
        %463 = vmatprep.subr.mxu0 0.0
        %464 = vmatpush1.msra.mxu0 %v412
        %465 = vmatprep.subr.mxu0 0.0
        %466 = vmatpush1.msra.mxu0 %v413
        %467 = vmatprep.subr.mxu0 0.0
        %468 = vmatpush1.msra.mxu0 %v414
        %469 = vmatprep.subr.mxu0 0.0
        %470 = vmatpush1.msra.mxu0 0.0
        %471 = vmatprep.subr.mxu0 0.0
        %472 = vmatpush1.msra.mxu0 0.0
        %473 = vmatprep.subr.mxu0 0.0
        %474 = vmatpush1.msra.mxu0 0.0
        %475 = vmatprep.subr.mxu0 0.0
        %476 = vmatpush1.msra.mxu0 0.0
        %477 = vmatprep.subr.mxu0 0.0
        %478 = vmatpush1.msra.mxu0 0.0
        %479 = vmatprep.subr.mxu0 0.0
        %480 = vmatpush1.msra.mxu0 0.0
        %481 = vmatprep.subr.mxu0 0.0
        %482 = vmatpush1.msra.mxu0 0.0
        %483 = vmatprep.subr.mxu0 0.0
        %484 = vmatpush1.msra.mxu0 0.0
        %485 = vmatprep.subr.mxu0 0.0
        %486 = vmatpush1.msra.mxu0 0.0
        %487 = vmatprep.subr.mxu0 0.0
        %488 = vmatpush1.msra.mxu0 0.0
        %489 = vmatprep.subr.mxu0 0.0
        %490 = vmatpush1.msra.mxu0 0.0
        %491 = vmatprep.subr.mxu0 0.0
        %492 = vmatpush1.msra.mxu0 0.0
        %493 = vmatprep.subr.mxu0 0.0
        %494 = vmatpush1.msra.mxu0 0.0
        %495 = vmatprep.subr.mxu0 0.0
        %496 = vmatpush1.msra.mxu0 0.0
        %497 = vmatprep.subr.mxu0 0.0
        %498 = vmatpush1.msra.mxu0 0.0
        %499 = vmatprep.subr.mxu0 0.0
        %500 = vmatpush1.msra.mxu0 0.0
        %501 = vmatprep.subr.mxu0 0.0
        %502 = vmatpush1.msra.mxu0 0.0
        %503 = vmatprep.subr.mxu0 0.0
        %504 = vmatpush1.msra.mxu0 0.0
        %505 = vmatprep.subr.mxu0 0.0
        %506 = vmatpush1.msra.mxu0 0.0
        %507 = vmatprep.subr.mxu0 0.0
        %508 = vmatpush1.msra.mxu0 0.0
        %509 = vmatprep.subr.mxu0 0.0
        %510 = vmatpush1.msra.mxu0 0.0
        %511 = vmatprep.subr.mxu0 0.0
        %512 = vmatpush1.msra.mxu0 0.0
        %513 = vmatprep.subr.mxu0 0.0
        %514 = vmatpush1.msra.mxu0 0.0
        %515 = vmatprep.subr.mxu0 0.0
        %516 = vmatpush1.msra.mxu0 0.0
        %517 = vmatprep.subr.mxu0 0.0
        %518 = vmatpush1.msra.mxu0 0.0
        %519 = vmatprep.subr.mxu0 0.0
        %520 = vmatpush1.msra.mxu0 0.0
        %521 = vmatprep.subr.mxu0 0.0
        %522 = vmatpush1.msra.mxu0 0.0
        %523 = vmatprep.subr.mxu0 0.0
        %524 = vmatpush1.msra.mxu0 0.0
        %525 = vmatprep.mubr.f32.mxu0 0.0
        %526 = vmatmul.mubr.f32.gmra.mrb[0].mxu0 %v459
        %v527 = vpop.f32.mrb[0].mxu0
        %v528 = vadd.f32 %v456, %v527
        %v529 = vpop.f32.mrb[0].mxu0
        %530 = vdwg.mxu0
        %531 = vst [vmem:[%s322] sm:$0xff] %v528
        %s532 = sand.u32 %s185, 1
        %s533 = scalar_lea.sflag [#allocation4], %s532
        %s534 = sand.u32 %s185, 1
        %s535 = smul.addr %s534, 8
        %s536 = scalar_lea.vmem [#allocation8], %s535
        // Predicated region
        $region61: #{tpu_custom_call.1} parent=47 // pred_check
          %p537 = pneg %p195
        $region62: #{tpu_custom_call.1} parent=47 // pred_check_branch
          %539 = sbr.rel (%p537) target = $region64
        $region63: #{tpu_custom_call.1} parent=47 // pred_region
          %s541 = ssub.s32 128, 128
          %542 = vsyncadd %s533, %s541
          %s543 = smul.addr %s25, 128
          %s544 = scalar_lea.hbm %s7, %s543
          %s546 = sshll.u32 %s536, 4
          %s547 = int_to_ptr.vmem [resolvable:$true] %s546
          %549 = dma.vmem_to_hbm [thread:$0]  %s547, 128, %s544, %s533
        $region64: #{tpu_custom_call.1} parent=47 // pred_fallthru
          _
      $region48: #{tpu_custom_call.1} parent=5 // pred_fallthru
        _
      %p550 = scmp.le.s32.totalorder 2, %s20
      // Predicated region
      $region65: #{tpu_custom_call.1} parent=5 // pred_check
        %p551 = pneg %p550
      $region66: #{tpu_custom_call.1} parent=5 // pred_check_branch
        %553 = sbr.rel (%p551) target = $region68
      $region67: #{tpu_custom_call.1} parent=5 // pred_region
        %s554 = ssub.s32 %s20, 2
        // Predicated region
        $region69: #{tpu_custom_call.1} parent=67 // pred_check
          %p555 = pneg %p201
        $region70: #{tpu_custom_call.1} parent=67 // pred_check_branch
          %557 = sbr.rel (%p555) target = $region72
        $region71: #{tpu_custom_call.1} parent=67 // pred_region
          %s558 = sand.u32 %s186, 1
          %s559 = scalar_lea.sflag [#allocation4], %s558
          %s560 = sand.u32 %s186, 1
          %s561 = smul.addr %s560, 8
          %s562 = scalar_lea.vmem [#allocation8], %s561
          %563 = dma.done %s559, 128
        $region72: #{tpu_custom_call.1} parent=67 // pred_fallthru
          _
      $region68: #{tpu_custom_call.1} parent=5 // pred_fallthru
        _
    $region6: #{tpu_custom_call.1} parent=1 // loop_footer
      %s24 = sadd.s32 1, %s20
    $region7: #{tpu_custom_call.1} parent=1 // loop_footer_branch
      %19 = sbr.rel target = $region3
    $region8: #{tpu_custom_call.1} parent=1 // loop_exit
      _
    %564 = vsyncpa [#allocation3], 1
    %s565 = scalar_lea.sflag [#allocation3], 1
    %566 = vsyncpa %s565, 1
    %567 = vsyncpa [#allocation6], 1
    %568 = vsyncpa [#allocation4], 1
    %s569 = scalar_lea.sflag [#allocation4], 1
    %570 = vsyncpa %s569, 1

</llo_original>
